<compile_context>
chip_gen: v7x
topology: tpu7x:2x2x1
jax: 0.10.0
libtpu: 0.0.40
codegen_flags: <defaults>
</compile_context>

<pallas_src>
import jax
import jax.numpy as jnp
from jax.experimental import pallas as pl
from jax.experimental.pallas import tpu as pltpu

LANE = 128
MAX_TILE_F = 2048  # faces per grid step (lane-dense); whole small meshes fit in one step


def _round_up(x, m):
    return ((x + m - 1) // m) * m


def _classifier_kernel(packed_ref,
                       w1t_ref, b1_ref, w2t_ref, b2_ref, w3t_ref, b3_ref,
                       out_ref):
    # packed_ref block: [1, 10, TILE_F]
    #   rows 0:3  = V0 (x,y,z), rows 3:6 = V1, rows 6:9 = V2, row 9 = validity mask
    p = packed_ref[0]                         # [10, TILE_F]
    v0 = p[0:3, :]
    v1 = p[3:6, :]
    v2 = p[6:9, :]
    mask = p[9:10, :]                         # [1, TILE_F]

    # --- mesh_varifold: centroid, 0.5 * cross(V1-V0, V2-V0), clamped norm ---
    cent = (v0 + v1 + v2) * (1.0 / 3.0)       # [3, TILE_F]
    e1 = v1 - v0
    e2 = v2 - v0
    a0, a1, a2 = e1[0:1, :], e1[1:2, :], e1[2:3, :]
    c0, c1, c2 = e2[0:1, :], e2[1:2, :], e2[2:3, :]
    n0 = 0.5 * (a1 * c2 - a2 * c1)            # [1, TILE_F] each
    n1 = 0.5 * (a2 * c0 - a0 * c2)
    n2 = 0.5 * (a0 * c1 - a1 * c0)
    l = jnp.sqrt(jnp.maximum(n0 * n0 + n1 * n1 + n2 * n2, 1e-6))  # [1, TILE_F]
    inv_l = 1.0 / l

    # x = cat([C, N/L]) in coordinate-major layout -> [6, TILE_F]
    x = jnp.concatenate([cent, n0 * inv_l, n1 * inv_l, n2 * inv_l], axis=0)

    # --- h_classifier MLP (transposed): 6 -> 16 -> 64 -> c, Sigmoid activations ---
    h1 = jax.nn.sigmoid(
        jnp.dot(w1t_ref[...], x, preferred_element_type=jnp.float32) + b1_ref[...])
    h2 = jax.nn.sigmoid(
        jnp.dot(w2t_ref[...], h1, preferred_element_type=jnp.float32) + b2_ref[...])
    h3 = jnp.dot(w3t_ref[...], h2, preferred_element_type=jnp.float32) + b3_ref[...]

    # rows 0:c  -> per-face MLP output  (lane-dense)
    # row  c    -> masked per-face area L (reduced outside the kernel)
    out_ref[0] = jnp.concatenate([h3, l * mask], axis=0)


def classifier_forward(mesh_ls, params, num_classes):
    """Returns stack over meshes of  Omega(cat([C, N/L])) * sum(L)  -> [M, n_faces, c]."""
    W1, B1, W2, B2, W3, B3 = params
    W1T, W2T, W3T = W1.T, W2.T, W3.T                      # [16,6], [64,16], [c,64]
    B1c, B2c, B3c = B1.reshape(-1, 1), B2.reshape(-1, 1), B3.reshape(-1, 1)

    # torch.stack in the reference requires all meshes to have the same face count
    nf = mesh_ls[0][1].shape[0]
    tile_f = min(MAX_TILE_F, _round_up(nf, LANE))
    f_pad = _round_up(nf, tile_f)
    c = num_classes

    # glue: data-dependent vertex gather stays in plain JAX; pack everything into one slab
    # TODO(synk): for very large meshes the gather could be fused into the kernel via
    # scalar-prefetched face indices + DMA gather to avoid re-reading [F,3] arrays from HBM.
    slabs = []
    for V, F in mesh_ls:
        v0 = jnp.take(V, F[:, 0], axis=0).T               # [3, nf]
        v1 = jnp.take(V, F[:, 1], axis=0).T
        v2 = jnp.take(V, F[:, 2], axis=0).T
        mask = jnp.ones((1, nf), jnp.float32)
        slab = jnp.concatenate([v0, v1, v2, mask], axis=0)  # [10, nf]
        slabs.append(jnp.pad(slab, ((0, 0), (0, f_pad - nf))))
    packed = jnp.stack(slabs)                             # [M, 10, f_pad]
    m = packed.shape[0]

    def const_spec(arr):
        return pl.BlockSpec(arr.shape, lambda mi, fi: (0, 0))

    out = pl.pallas_call(
        _classifier_kernel,
        out_shape=jax.ShapeDtypeStruct((m, c + 1, f_pad), jnp.float32),
        grid_spec=pltpu.PrefetchScalarGridSpec(
            num_scalar_prefetch=0,
            grid=(m, f_pad // tile_f),
            in_specs=[pl.BlockSpec((1, 10, tile_f), lambda mi, fi: (mi, 0, fi)),
                      const_spec(W1T), const_spec(B1c),
                      const_spec(W2T), const_spec(B2c),
                      const_spec(W3T), const_spec(B3c)],
            out_specs=pl.BlockSpec((1, c + 1, tile_f), lambda mi, fi: (mi, 0, fi))),
        compiler_params=pltpu.CompilerParams(
            dimension_semantics=("parallel", "parallel")),
    )(packed, W1T, B1c, W2T, B2c, W3T, B3c)

    h = out[:, :c, :nf]                                   # [M, c, nf]
    lsum = jnp.sum(out[:, c, :], axis=-1)                 # [M]  (padded lanes are 0)
    # PyTorch broadcast:  (Omega(X) * L[:, None]).sum(dim=0) == Omega(X) * L.sum()
    return jnp.transpose(h, (0, 2, 1)) * lsum[:, None, None]


# ------------------------- pure-JAX reference -------------------------
def _reference_forward(mesh_ls, params, num_classes):
    W1, B1, W2, B2, W3, B3 = params
    outs = []
    for V, F in mesh_ls:
        v0, v1, v2 = V[F[:, 0]], V[F[:, 1]], V[F[:, 2]]
        C = (v0 + v1 + v2) / 3.0
        N = 0.5 * jnp.cross(v1 - v0, v2 - v0)
        L = jnp.sqrt(jnp.maximum(jnp.sum(N ** 2, axis=1)[:, None], 1e-6))
        x = jnp.concatenate([C, N / L], axis=1)
        h = jax.nn.sigmoid(x @ W1 + B1)
        h = jax.nn.sigmoid(h @ W2 + B2)
        h = h @ W3 + B3
        # exact PyTorch broadcast semantics (mesh branch): [F,c]*[F,1,1] -> sum(dim=0)
        outs.append((h * L[:, None]).sum(axis=0))
    return jnp.stack(outs)


def _linear_init(key, fan_in, fan_out):
    kw, kb = jax.random.split(key)
    bound = 1.0 / jnp.sqrt(fan_in)
    W = jax.random.uniform(kw, (fan_in, fan_out), jnp.float32, -bound, bound)
    B = jax.random.uniform(kb, (1, fan_out), jnp.float32, -bound, bound)
    return W, B


if __name__ == "__main__":
    num_classes = 5
    num_meshes = 2
    n_verts, n_faces = 12, 20

    key = jax.random.PRNGKey(0)
    k_param, k_data = jax.random.split(key)

    # deterministic synthetic h_classifier parameters: 6 -> 16 -> 64 -> c
    k1, k2, k3 = jax.random.split(k_param, 3)
    W1, B1 = _linear_init(k1, 6, 16)
    W2, B2 = _linear_init(k2, 16, 64)
    W3, B3 = _linear_init(k3, 64, num_classes)
    params = (W1, B1, W2, B2, W3, B3)

    # deterministic synthetic meshes: (vertices [nv,3] f32, faces [nf,3] i32)
    mesh_ls = []
    dkeys = jax.random.split(k_data, num_meshes)
    for dk in dkeys:
        kv, kf = jax.random.split(dk)
        V = jax.random.normal(kv, (n_verts, 3), jnp.float32)
        F = jax.random.randint(kf, (n_faces, 3), 0, n_verts, jnp.int32)
        mesh_ls.append((V, F))

    out = classifier_forward(mesh_ls, params, num_classes)
    out = jax.block_until_ready(out)

    ref = _reference_forward(mesh_ls, params, num_classes)
    assert out.shape == (num_meshes, n_faces, num_classes), out.shape
    assert jnp.allclose(out, ref, rtol=1e-4, atol=1e-4), \
        float(jnp.max(jnp.abs(out - ref)))

    print("KERNEL_OK")
</pallas_src>

<mosaic_0001>
module attributes {stable_mosaic.version = 11 : i64} {
  func.func @_classifier_kernel(%arg0: i32, %arg1: i32, %arg2: memref<1x10x128xf32, #tpu.memory_space<vmem>>, %arg3: memref<16x6xf32, #tpu.memory_space<vmem>>, %arg4: memref<16x1xf32, #tpu.memory_space<vmem>>, %arg5: memref<64x16xf32, #tpu.memory_space<vmem>>, %arg6: memref<64x1xf32, #tpu.memory_space<vmem>>, %arg7: memref<5x64xf32, #tpu.memory_space<vmem>>, %arg8: memref<5x1xf32, #tpu.memory_space<vmem>>, %arg9: memref<1x6x128xf32, #tpu.memory_space<vmem>>) attributes {dimension_semantics = [#tpu.dimension_semantics<parallel>, #tpu.dimension_semantics<parallel>], iteration_bounds = array<i64: 2, 1>, scalar_prefetch = 0 : i64, scratch_operands = 0 : i64, tpu.core_type = #tpu.core_type<tc>, window_params = [{transform_indices = @transform_0, window_bounds = array<i64: 1, 10, 128>}, {pipeline_mode = #tpu.pipeline_mode<synchronous>, transform_indices = @transform_1, window_bounds = array<i64: 16, 6>}, {pipeline_mode = #tpu.pipeline_mode<synchronous>, transform_indices = @transform_2, window_bounds = array<i64: 16, 1>}, {pipeline_mode = #tpu.pipeline_mode<synchronous>, transform_indices = @transform_3, window_bounds = array<i64: 64, 16>}, {pipeline_mode = #tpu.pipeline_mode<synchronous>, transform_indices = @transform_4, window_bounds = array<i64: 64, 1>}, {pipeline_mode = #tpu.pipeline_mode<synchronous>, transform_indices = @transform_5, window_bounds = array<i64: 5, 64>}, {pipeline_mode = #tpu.pipeline_mode<synchronous>, transform_indices = @transform_6, window_bounds = array<i64: 5, 1>}, {transform_indices = @transform_7, window_bounds = array<i64: 1, 6, 128>}]} {
    %c0 = arith.constant 0 : index
    %c0_0 = arith.constant 0 : index
    %c0_1 = arith.constant 0 : index
    %0 = vector.load %arg2[%c0, %c0_0, %c0_1] : memref<1x10x128xf32, #tpu.memory_space<vmem>>, vector<1x10x128xf32>
    %1 = vector.shape_cast %0 : vector<1x10x128xf32> to vector<10x128xf32>
    %2 = vector.extract_strided_slice %1 {offsets = [0, 0], sizes = [3, 128], strides = [1, 1]} : vector<10x128xf32> to vector<3x128xf32>
    %3 = vector.extract_strided_slice %1 {offsets = [3, 0], sizes = [3, 128], strides = [1, 1]} : vector<10x128xf32> to vector<3x128xf32>
    %4 = vector.extract_strided_slice %1 {offsets = [6, 0], sizes = [3, 128], strides = [1, 1]} : vector<10x128xf32> to vector<3x128xf32>
    %5 = vector.extract_strided_slice %1 {offsets = [9, 0], sizes = [1, 128], strides = [1, 1]} : vector<10x128xf32> to vector<1x128xf32>
    %6 = arith.addf %2, %3 : vector<3x128xf32>
    %7 = arith.addf %6, %4 : vector<3x128xf32>
    %cst = arith.constant 0.333333343 : f32
    %8 = vector.broadcast %cst : f32 to vector<3x128xf32>
    %9 = arith.mulf %7, %8 : vector<3x128xf32>
    %10 = arith.subf %3, %2 : vector<3x128xf32>
    %11 = arith.subf %4, %2 : vector<3x128xf32>
    %12 = vector.extract_strided_slice %10 {offsets = [0, 0], sizes = [1, 128], strides = [1, 1]} : vector<3x128xf32> to vector<1x128xf32>
    %13 = vector.extract_strided_slice %10 {offsets = [1, 0], sizes = [1, 128], strides = [1, 1]} : vector<3x128xf32> to vector<1x128xf32>
    %14 = vector.extract_strided_slice %10 {offsets = [2, 0], sizes = [1, 128], strides = [1, 1]} : vector<3x128xf32> to vector<1x128xf32>
    %15 = vector.extract_strided_slice %11 {offsets = [0, 0], sizes = [1, 128], strides = [1, 1]} : vector<3x128xf32> to vector<1x128xf32>
    %16 = vector.extract_strided_slice %11 {offsets = [1, 0], sizes = [1, 128], strides = [1, 1]} : vector<3x128xf32> to vector<1x128xf32>
    %17 = vector.extract_strided_slice %11 {offsets = [2, 0], sizes = [1, 128], strides = [1, 1]} : vector<3x128xf32> to vector<1x128xf32>
    %18 = arith.mulf %13, %17 : vector<1x128xf32>
    %19 = arith.mulf %14, %16 : vector<1x128xf32>
    %20 = arith.subf %18, %19 : vector<1x128xf32>
    %cst_2 = arith.constant 5.000000e-01 : f32
    %21 = vector.broadcast %cst_2 : f32 to vector<1x128xf32>
    %22 = arith.mulf %21, %20 : vector<1x128xf32>
    %23 = arith.mulf %14, %15 : vector<1x128xf32>
    %24 = arith.mulf %12, %17 : vector<1x128xf32>
    %25 = arith.subf %23, %24 : vector<1x128xf32>
    %cst_3 = arith.constant 5.000000e-01 : f32
    %26 = vector.broadcast %cst_3 : f32 to vector<1x128xf32>
    %27 = arith.mulf %26, %25 : vector<1x128xf32>
    %28 = arith.mulf %12, %16 : vector<1x128xf32>
    %29 = arith.mulf %13, %15 : vector<1x128xf32>
    %30 = arith.subf %28, %29 : vector<1x128xf32>
    %cst_4 = arith.constant 5.000000e-01 : f32
    %31 = vector.broadcast %cst_4 : f32 to vector<1x128xf32>
    %32 = arith.mulf %31, %30 : vector<1x128xf32>
    %33 = arith.mulf %22, %22 : vector<1x128xf32>
    %34 = arith.mulf %27, %27 : vector<1x128xf32>
    %35 = arith.addf %33, %34 : vector<1x128xf32>
    %36 = arith.mulf %32, %32 : vector<1x128xf32>
    %37 = arith.addf %35, %36 : vector<1x128xf32>
    %cst_5 = arith.constant 9.99999997E-7 : f32
    %38 = vector.broadcast %cst_5 : f32 to vector<1x128xf32>
    %39 = arith.maximumf %37, %38 : vector<1x128xf32>
    %40 = math.sqrt %39 : vector<1x128xf32>
    %cst_6 = arith.constant 1.000000e+00 : f32
    %41 = vector.broadcast %cst_6 : f32 to vector<1x128xf32>
    %42 = arith.divf %41, %40 : vector<1x128xf32>
    %43 = arith.mulf %22, %42 : vector<1x128xf32>
    %44 = arith.mulf %27, %42 : vector<1x128xf32>
    %45 = arith.mulf %32, %42 : vector<1x128xf32>
    %46 = tpu.concatenate %9, %43, %44, %45 in 0 : vector<3x128xf32>, vector<1x128xf32>, vector<1x128xf32>, vector<1x128xf32> -> vector<6x128xf32>
    %c0_7 = arith.constant 0 : index
    %c0_8 = arith.constant 0 : index
    %47 = vector.load %arg3[%c0_7, %c0_8] : memref<16x6xf32, #tpu.memory_space<vmem>>, vector<16x6xf32>
    %cst_9 = arith.constant dense<0.000000e+00> : vector<16x128xf32>
    %48 = tpu.matmul %47, %46, %cst_9 {dimension_numbers = #tpu.dot_dimension_numbers<[1], [0], [0], [1], [0, 0, 1, 1], [], []>} : vector<16x6xf32>, vector<6x128xf32>, vector<16x128xf32> -> vector<16x128xf32>
    %c0_10 = arith.constant 0 : index
    %c0_11 = arith.constant 0 : index
    %49 = vector.load %arg4[%c0_10, %c0_11] : memref<16x1xf32, #tpu.memory_space<vmem>>, vector<16x1xf32>
    %50 = vector.broadcast %49 : vector<16x1xf32> to vector<16x128xf32>
    %51 = arith.addf %48, %50 : vector<16x128xf32>
    %52 = arith.negf %51 : vector<16x128xf32>
    %53 = math.exp %52 : vector<16x128xf32>
    %cst_12 = arith.constant 1.000000e+00 : f32
    %54 = vector.broadcast %cst_12 : f32 to vector<16x128xf32>
    %55 = arith.addf %54, %53 : vector<16x128xf32>
    %56 = arith.divf %54, %55 : vector<16x128xf32>
    %c0_13 = arith.constant 0 : index
    %c0_14 = arith.constant 0 : index
    %57 = vector.load %arg5[%c0_13, %c0_14] : memref<64x16xf32, #tpu.memory_space<vmem>>, vector<64x16xf32>
    %cst_15 = arith.constant dense<0.000000e+00> : vector<64x128xf32>
    %58 = tpu.matmul %57, %56, %cst_15 {dimension_numbers = #tpu.dot_dimension_numbers<[1], [0], [0], [1], [0, 0, 1, 1], [], []>} : vector<64x16xf32>, vector<16x128xf32>, vector<64x128xf32> -> vector<64x128xf32>
    %c0_16 = arith.constant 0 : index
    %c0_17 = arith.constant 0 : index
    %59 = vector.load %arg6[%c0_16, %c0_17] : memref<64x1xf32, #tpu.memory_space<vmem>>, vector<64x1xf32>
    %60 = vector.broadcast %59 : vector<64x1xf32> to vector<64x128xf32>
    %61 = arith.addf %58, %60 : vector<64x128xf32>
    %62 = arith.negf %61 : vector<64x128xf32>
    %63 = math.exp %62 : vector<64x128xf32>
    %cst_18 = arith.constant 1.000000e+00 : f32
    %64 = vector.broadcast %cst_18 : f32 to vector<64x128xf32>
    %65 = arith.addf %64, %63 : vector<64x128xf32>
    %66 = arith.divf %64, %65 : vector<64x128xf32>
    %c0_19 = arith.constant 0 : index
    %c0_20 = arith.constant 0 : index
    %67 = vector.load %arg7[%c0_19, %c0_20] : memref<5x64xf32, #tpu.memory_space<vmem>>, vector<5x64xf32>
    %cst_21 = arith.constant dense<0.000000e+00> : vector<5x128xf32>
    %68 = tpu.matmul %67, %66, %cst_21 {dimension_numbers = #tpu.dot_dimension_numbers<[1], [0], [0], [1], [0, 0, 1, 1], [], []>} : vector<5x64xf32>, vector<64x128xf32>, vector<5x128xf32> -> vector<5x128xf32>
    %c0_22 = arith.constant 0 : index
    %c0_23 = arith.constant 0 : index
    %69 = vector.load %arg8[%c0_22, %c0_23] : memref<5x1xf32, #tpu.memory_space<vmem>>, vector<5x1xf32>
    %70 = vector.broadcast %69 : vector<5x1xf32> to vector<5x128xf32>
    %71 = arith.addf %68, %70 : vector<5x128xf32>
    %72 = arith.mulf %40, %5 : vector<1x128xf32>
    %73 = tpu.concatenate %71, %72 in 0 : vector<5x128xf32>, vector<1x128xf32> -> vector<6x128xf32>
    %c0_24 = arith.constant 0 : index
    %c0_25 = arith.constant 0 : index
    %c0_26 = arith.constant 0 : index
    %74 = vector.load %arg9[%c0_24, %c0_25, %c0_26] : memref<1x6x128xf32, #tpu.memory_space<vmem>>, vector<1x6x128xf32>
    %75 = vector.shape_cast %74 : vector<1x6x128xf32> to vector<6x128xf32>
    %76 = vector.shape_cast %73 : vector<6x128xf32> to vector<1x6x128xf32>
    tpu.vector_store %arg9[%c0_24, %c0_25, %c0_26], %76 {strides = array<i32>} : memref<1x6x128xf32, #tpu.memory_space<vmem>>, vector<1x6x128xf32>,
    return
  }
  func.func @transform_0(%arg0: i32, %arg1: i32) -> (i32, i32, i32) {
    %c0_i32 = arith.constant 0 : i32
    %c0_i32_0 = arith.constant 0 : i32
    return %arg0, %c0_i32, %arg1 : i32, i32, i32
  }
  func.func @transform_1(%arg0: i32, %arg1: i32) -> (i32, i32) {
    %c0_i32 = arith.constant 0 : i32
    %c0_i32_0 = arith.constant 0 : i32
    %c0_i32_1 = arith.constant 0 : i32
    return %c0_i32, %c0_i32_0 : i32, i32
  }
  func.func @transform_2(%arg0: i32, %arg1: i32) -> (i32, i32) {
    %c0_i32 = arith.constant 0 : i32
    %c0_i32_0 = arith.constant 0 : i32
    %c0_i32_1 = arith.constant 0 : i32
    return %c0_i32, %c0_i32_0 : i32, i32
  }
  func.func @transform_3(%arg0: i32, %arg1: i32) -> (i32, i32) {
    %c0_i32 = arith.constant 0 : i32
    %c0_i32_0 = arith.constant 0 : i32
    %c0_i32_1 = arith.constant 0 : i32
    return %c0_i32, %c0_i32_0 : i32, i32
  }
  func.func @transform_4(%arg0: i32, %arg1: i32) -> (i32, i32) {
    %c0_i32 = arith.constant 0 : i32
    %c0_i32_0 = arith.constant 0 : i32
    %c0_i32_1 = arith.constant 0 : i32
    return %c0_i32, %c0_i32_0 : i32, i32
  }
  func.func @transform_5(%arg0: i32, %arg1: i32) -> (i32, i32) {
    %c0_i32 = arith.constant 0 : i32
    %c0_i32_0 = arith.constant 0 : i32
    %c0_i32_1 = arith.constant 0 : i32
    return %c0_i32, %c0_i32_0 : i32, i32
  }
  func.func @transform_6(%arg0: i32, %arg1: i32) -> (i32, i32) {
    %c0_i32 = arith.constant 0 : i32
    %c0_i32_0 = arith.constant 0 : i32
    %c0_i32_1 = arith.constant 0 : i32
    return %c0_i32, %c0_i32_0 : i32, i32
  }
  func.func @transform_7(%arg0: i32, %arg1: i32) -> (i32, i32, i32) {
    %c0_i32 = arith.constant 0 : i32
    %c0_i32_0 = arith.constant 0 : i32
    return %arg0, %c0_i32, %arg1 : i32, i32, i32
  }
}

</mosaic_0001>

<llo_original>
// kernel: tpu_custom_call.1
$region0: #{tpu_custom_call.1}
  #allocation0 [shape = 'u32[]', space=smem, size = 0x4, offset = 0x4, fixed_abs, tag = 'smem constant byte address 0x4 - core index']
  #allocation1 [shape = 'u32[144,128]{1,0:T(1,128)}', space=vmem, size = 0x12000, scoped, tag = 'internal scratch']
  %s0 = inlined_call_operand.vmem [shape: f32[2,10,128], index: 0, kind: input, shape index: {}]
  %s1 = inlined_call_operand.vmem [shape: f32[16,6], index: 1, kind: input, shape index: {}]
  %s2 = inlined_call_operand.vmem [shape: f32[16,1], index: 2, kind: input, shape index: {}]
  %s3 = inlined_call_operand.vmem [shape: f32[64,16], index: 3, kind: input, shape index: {}]
  %s4 = inlined_call_operand.vmem [shape: f32[64,1], index: 4, kind: input, shape index: {}]
  %s5 = inlined_call_operand.vmem [shape: f32[5,64], index: 5, kind: input, shape index: {}]
  %s6 = inlined_call_operand.vmem [shape: f32[5,1], index: 6, kind: input, shape index: {}]
  %s7 = inlined_call_operand.vmem [shape: f32[2,6,128], index: 7, kind: output, shape index: {}]
  %s8 = sld [smem:[#allocation0]]
  $region61: #{tpu_custom_call.1} parent=0
    _
  %s10 = ssub.s32 1, %s8
  %s11 = scalar_select 0, %s10, %s8
  loop: start=0, step=1, limit=4
  $region2: #{tpu_custom_call.1} parent=0 // loop_pre_header
    _
  $region3: #{tpu_custom_call.1} parent=0 // loop_header
    %s13 = sphi 0, %s17
    %p14 = scmp.ge.s32.totalorder %s13, 4
    %s20 = sphi 0, %s32
    %s21 = sphi 0, %s28
    %s22 = sphi 0, %s20
    %s23 = sphi 0, %s21
    %s24 = sphi 0, %s22
    %s25 = sphi 0, %s23
    %s37 = sphi 0, %s39
    %s40 = sphi 0, %s37
    %s41 = sphi 0, %s40
    %s57 = sphi 0, %s41
    %s61 = sphi 0, %s61
    %s63 = sphi 0, %s61
    %s64 = sphi 0, %s63
    %s78 = sphi 0, %s64
    %s82 = sphi 0, %s82
    %s84 = sphi 0, %s82
    %s85 = sphi 0, %s84
    %s99 = sphi 0, %s85
    %s103 = sphi 0, %s103
    %s105 = sphi 0, %s103
    %s106 = sphi 0, %s105
    %s120 = sphi 0, %s106
    %s124 = sphi 0, %s124
    %s126 = sphi 0, %s124
    %s127 = sphi 0, %s126
    %s141 = sphi 0, %s127
    %s145 = sphi 0, %s145
    %s147 = sphi 0, %s145
    %s148 = sphi 0, %s147
    %s162 = sphi 0, %s148
    %s166 = sphi 0, %s166
    %s168 = sphi 0, %s166
    %s169 = sphi 0, %s168
    %s183 = sphi 0, %s169
    %s191 = sphi 0, %s193
    %s194 = sphi 0, %s191
    %s195 = sphi 0, %s194
    %s211 = sphi 0, %s195
  $region4: #{tpu_custom_call.1} parent=0 // loop_header_branch
    %16 = sbr.rel (%p14) target = $region8
  $region5: #{tpu_custom_call.1} parent=0 // loop_body
    %s18 = ssub.s32 %s13, 1
    %s19 = ssub.s32 %s13, 2
    %s26 = sadd.s32 1, %s21
    %p27 = scmp.ge.s32.totalorder %s26, 1
    %s28 = scalar_select %p27, 0, %s26
    %s29 = sadd.s32 1, %s20
    %s30 = scalar_select %p27, %s29, %s20
    %p31 = scmp.ge.s32.totalorder %s30, 2
    %s32 = scalar_select %p31, 0, %s30
    %s33 = ssub.s32 %s20, %s32
    %s34 = ssub.s32 %s21, %s28
    %s35 = sor.u32 %s33, %s34
    %p36 = scmp.eq.s32.totalorder %s35, 0
    %s38 = sadd.s32 %s37, 1
    %s39 = scalar_select %p36, %s37, %s38
    %p42 = pneg %p36
    %p43 = scmp.eq.s32.totalorder %s13, 1
    %p44 = por %p42, %p43
    %p45 = scmp.ne.s32.totalorder %s37, %s40
    %p46 = scmp.eq.s32.totalorder %s13, 0
    %p47 = por %p45, %p46
    %p48 = scmp.ne.s32.totalorder %s37, %s40
    %p49 = scmp.eq.s32.totalorder %s18, 1
    %p50 = por %p48, %p49
    %p51 = scmp.ne.s32.totalorder %s40, %s41
    %p52 = scmp.eq.s32.totalorder %s18, 0
    %p53 = por %p51, %p52
    %p54 = scmp.ne.s32.totalorder %s40, %s41
    %p55 = scmp.eq.s32.totalorder %s19, 1
    %p56 = por %p54, %p55
    %p58 = scmp.ne.s32.totalorder %s41, %s57
    %p59 = scmp.eq.s32.totalorder %s19, 0
    %p60 = por %p58, %p59
    %s62 = sadd.s32 %s61, 1
    %p65 = scmp.eq.s32.totalorder %s13, 1
    %p66 = scmp.ne.s32.totalorder %s61, %s63
    %p67 = scmp.eq.s32.totalorder %s13, 0
    %p68 = por %p66, %p67
    %p69 = scmp.ne.s32.totalorder %s61, %s63
    %p70 = scmp.eq.s32.totalorder %s18, 1
    %p71 = por %p69, %p70
    %p72 = scmp.ne.s32.totalorder %s63, %s64
    %p73 = scmp.eq.s32.totalorder %s18, 0
    %p74 = por %p72, %p73
    %p75 = scmp.ne.s32.totalorder %s63, %s64
    %p76 = scmp.eq.s32.totalorder %s19, 1
    %p77 = por %p75, %p76
    %p79 = scmp.ne.s32.totalorder %s64, %s78
    %p80 = scmp.eq.s32.totalorder %s19, 0
    %p81 = por %p79, %p80
    %s83 = sadd.s32 %s82, 1
    %p86 = scmp.eq.s32.totalorder %s13, 1
    %p87 = scmp.ne.s32.totalorder %s82, %s84
    %p88 = scmp.eq.s32.totalorder %s13, 0
    %p89 = por %p87, %p88
    %p90 = scmp.ne.s32.totalorder %s82, %s84
    %p91 = scmp.eq.s32.totalorder %s18, 1
    %p92 = por %p90, %p91
    %p93 = scmp.ne.s32.totalorder %s84, %s85
    %p94 = scmp.eq.s32.totalorder %s18, 0
    %p95 = por %p93, %p94
    %p96 = scmp.ne.s32.totalorder %s84, %s85
    %p97 = scmp.eq.s32.totalorder %s19, 1
    %p98 = por %p96, %p97
    %p100 = scmp.ne.s32.totalorder %s85, %s99
    %p101 = scmp.eq.s32.totalorder %s19, 0
    %p102 = por %p100, %p101
    %s104 = sadd.s32 %s103, 1
    %p107 = scmp.eq.s32.totalorder %s13, 1
    %p108 = scmp.ne.s32.totalorder %s103, %s105
    %p109 = scmp.eq.s32.totalorder %s13, 0
    %p110 = por %p108, %p109
    %p111 = scmp.ne.s32.totalorder %s103, %s105
    %p112 = scmp.eq.s32.totalorder %s18, 1
    %p113 = por %p111, %p112
    %p114 = scmp.ne.s32.totalorder %s105, %s106
    %p115 = scmp.eq.s32.totalorder %s18, 0
    %p116 = por %p114, %p115
    %p117 = scmp.ne.s32.totalorder %s105, %s106
    %p118 = scmp.eq.s32.totalorder %s19, 1
    %p119 = por %p117, %p118
    %p121 = scmp.ne.s32.totalorder %s106, %s120
    %p122 = scmp.eq.s32.totalorder %s19, 0
    %p123 = por %p121, %p122
    %s125 = sadd.s32 %s124, 1
    %p128 = scmp.eq.s32.totalorder %s13, 1
    %p129 = scmp.ne.s32.totalorder %s124, %s126
    %p130 = scmp.eq.s32.totalorder %s13, 0
    %p131 = por %p129, %p130
    %p132 = scmp.ne.s32.totalorder %s124, %s126
    %p133 = scmp.eq.s32.totalorder %s18, 1
    %p134 = por %p132, %p133
    %p135 = scmp.ne.s32.totalorder %s126, %s127
    %p136 = scmp.eq.s32.totalorder %s18, 0
    %p137 = por %p135, %p136
    %p138 = scmp.ne.s32.totalorder %s126, %s127
    %p139 = scmp.eq.s32.totalorder %s19, 1
    %p140 = por %p138, %p139
    %p142 = scmp.ne.s32.totalorder %s127, %s141
    %p143 = scmp.eq.s32.totalorder %s19, 0
    %p144 = por %p142, %p143
    %s146 = sadd.s32 %s145, 1
    %p149 = scmp.eq.s32.totalorder %s13, 1
    %p150 = scmp.ne.s32.totalorder %s145, %s147
    %p151 = scmp.eq.s32.totalorder %s13, 0
    %p152 = por %p150, %p151
    %p153 = scmp.ne.s32.totalorder %s145, %s147
    %p154 = scmp.eq.s32.totalorder %s18, 1
    %p155 = por %p153, %p154
    %p156 = scmp.ne.s32.totalorder %s147, %s148
    %p157 = scmp.eq.s32.totalorder %s18, 0
    %p158 = por %p156, %p157
    %p159 = scmp.ne.s32.totalorder %s147, %s148
    %p160 = scmp.eq.s32.totalorder %s19, 1
    %p161 = por %p159, %p160
    %p163 = scmp.ne.s32.totalorder %s148, %s162
    %p164 = scmp.eq.s32.totalorder %s19, 0
    %p165 = por %p163, %p164
    %s167 = sadd.s32 %s166, 1
    %p170 = scmp.eq.s32.totalorder %s13, 1
    %p171 = scmp.ne.s32.totalorder %s166, %s168
    %p172 = scmp.eq.s32.totalorder %s13, 0
    %p173 = por %p171, %p172
    %p174 = scmp.ne.s32.totalorder %s166, %s168
    %p175 = scmp.eq.s32.totalorder %s18, 1
    %p176 = por %p174, %p175
    %p177 = scmp.ne.s32.totalorder %s168, %s169
    %p178 = scmp.eq.s32.totalorder %s18, 0
    %p179 = por %p177, %p178
    %p180 = scmp.ne.s32.totalorder %s168, %s169
    %p181 = scmp.eq.s32.totalorder %s19, 1
    %p182 = por %p180, %p181
    %p184 = scmp.ne.s32.totalorder %s169, %s183
    %p185 = scmp.eq.s32.totalorder %s19, 0
    %p186 = por %p184, %p185
    %s187 = ssub.s32 %s20, %s32
    %s188 = ssub.s32 %s21, %s28
    %s189 = sor.u32 %s187, %s188
    %p190 = scmp.eq.s32.totalorder %s189, 0
    %s192 = sadd.s32 %s191, 1
    %s193 = scalar_select %p190, %s191, %s192
    %p196 = pneg %p190
    %p197 = scmp.eq.s32.totalorder %s13, 1
    %p198 = por %p196, %p197
    %p199 = scmp.ne.s32.totalorder %s191, %s194
    %p200 = scmp.eq.s32.totalorder %s13, 0
    %p201 = por %p199, %p200
    %p202 = scmp.ne.s32.totalorder %s191, %s194
    %p203 = scmp.eq.s32.totalorder %s18, 1
    %p204 = por %p202, %p203
    %p205 = scmp.ne.s32.totalorder %s194, %s195
    %p206 = scmp.eq.s32.totalorder %s18, 0
    %p207 = por %p205, %p206
    %p208 = scmp.ne.s32.totalorder %s194, %s195
    %p209 = scmp.eq.s32.totalorder %s19, 1
    %p210 = por %p208, %p209
    %p212 = scmp.ne.s32.totalorder %s195, %s211
    %p213 = scmp.eq.s32.totalorder %s19, 0
    %p214 = por %p212, %p213
    %p215 = scmp.le.s32.totalorder 1, %s13
    %p216 = scmp.lt.s32.totalorder %s13, 3
    %p217 = pnand %p215, %p216
    %p218 = pneg %p217
    // Predicated region
    $region9: #{tpu_custom_call.1} parent=5 // pred_check
      _
    $region10: #{tpu_custom_call.1} parent=5 // pred_check_branch
      %220 = sbr.rel (%p217) target = $region12
    $region11: #{tpu_custom_call.1} parent=5 // pred_region
      %s221 = ssub.s32 %s13, 1
      // Predicated region
      $region13: #{tpu_custom_call.1} parent=11 // pred_check
        %p222 = pneg %p74
      $region14: #{tpu_custom_call.1} parent=11 // pred_check_branch
        %224 = sbr.rel (%p222) target = $region16
      $region15: #{tpu_custom_call.1} parent=11 // pred_region
        _
      $region16: #{tpu_custom_call.1} parent=11 // pred_fallthru
        _
      // Predicated region
      $region17: #{tpu_custom_call.1} parent=11 // pred_check
        %p225 = pneg %p95
      $region18: #{tpu_custom_call.1} parent=11 // pred_check_branch
        %227 = sbr.rel (%p225) target = $region20
      $region19: #{tpu_custom_call.1} parent=11 // pred_region
        _
      $region20: #{tpu_custom_call.1} parent=11 // pred_fallthru
        _
      // Predicated region
      $region21: #{tpu_custom_call.1} parent=11 // pred_check
        %p228 = pneg %p116
      $region22: #{tpu_custom_call.1} parent=11 // pred_check_branch
        %230 = sbr.rel (%p228) target = $region24
      $region23: #{tpu_custom_call.1} parent=11 // pred_region
        _
      $region24: #{tpu_custom_call.1} parent=11 // pred_fallthru
        _
      // Predicated region
      $region25: #{tpu_custom_call.1} parent=11 // pred_check
        %p231 = pneg %p137
      $region26: #{tpu_custom_call.1} parent=11 // pred_check_branch
        %233 = sbr.rel (%p231) target = $region28
      $region27: #{tpu_custom_call.1} parent=11 // pred_region
        _
      $region28: #{tpu_custom_call.1} parent=11 // pred_fallthru
        _
      // Predicated region
      $region29: #{tpu_custom_call.1} parent=11 // pred_check
        %p234 = pneg %p158
      $region30: #{tpu_custom_call.1} parent=11 // pred_check_branch
        %236 = sbr.rel (%p234) target = $region32
      $region31: #{tpu_custom_call.1} parent=11 // pred_region
        _
      $region32: #{tpu_custom_call.1} parent=11 // pred_fallthru
        _
      // Predicated region
      $region33: #{tpu_custom_call.1} parent=11 // pred_check
        %p237 = pneg %p179
      $region34: #{tpu_custom_call.1} parent=11 // pred_check_branch
        %239 = sbr.rel (%p237) target = $region36
      $region35: #{tpu_custom_call.1} parent=11 // pred_region
        _
      $region36: #{tpu_custom_call.1} parent=11 // pred_fallthru
        _
    $region12: #{tpu_custom_call.1} parent=5 // pred_fallthru
      _
    %p240 = scmp.lt.s32.totalorder %s13, 2
    // Predicated region
    $region37: #{tpu_custom_call.1} parent=5 // pred_check
      %p241 = pneg %p240
    $region38: #{tpu_custom_call.1} parent=5 // pred_check_branch
      %243 = sbr.rel (%p241) target = $region40
    $region39: #{tpu_custom_call.1} parent=5 // pred_region
      // Predicated region
      $region41: #{tpu_custom_call.1} parent=39 // pred_check
        %p244 = pneg %p47
      $region42: #{tpu_custom_call.1} parent=39 // pred_check_branch
        %246 = sbr.rel (%p244) target = $region44
      $region43: #{tpu_custom_call.1} parent=39 // pred_region
        %p247 = scmp.lt.s32.totalorder %s20, 1
        %s248 = scalar_select %p247, %s20, 1
        %p249 = scmp.lt.s32.totalorder %s21, 0
        %s250 = scalar_select %p249, %s21, 0
        %s251 = smul.addr %s248, 2
        %s252 = sadd.s32 %s250, %s251
        %s253 = smul.addr %s252, 8
        %s254 = scalar_lea.vmem %s0, %s253
      $region44: #{tpu_custom_call.1} parent=39 // pred_fallthru
        _
    $region40: #{tpu_custom_call.1} parent=5 // pred_fallthru
      _
    %p255 = scmp.le.s32.totalorder 1, %s13
    %p256 = scmp.lt.s32.totalorder %s13, 3
    %p257 = pnand %p255, %p256
    %p258 = pneg %p257
    // Predicated region
    $region45: #{tpu_custom_call.1} parent=5 // pred_check
      _
    $region46: #{tpu_custom_call.1} parent=5 // pred_check_branch
      %260 = sbr.rel (%p257) target = $region48
    $region47: #{tpu_custom_call.1} parent=5 // pred_region
      %s261 = ssub.s32 %s13, 1
      %p262 = scmp.lt.s32.totalorder %s22, 1
      %s263 = scalar_select %p262, %s22, 1
      %p264 = scmp.lt.s32.totalorder %s23, 0
      %s265 = scalar_select %p264, %s23, 0
      %s266 = smul.addr %s263, 2
      %s267 = sadd.s32 %s265, %s266
      %s268 = smul.addr %s267, 8
      %s269 = scalar_lea.vmem %s0, %s268
      %p270 = pneg %p53
      %p271 = pneg %p50
      %p272 = pneg %p74
      %p273 = pneg %p71
      %p274 = pneg %p95
      %p275 = pneg %p92
      %p276 = pneg %p116
      %p277 = pneg %p113
      %p278 = pneg %p137
      %p279 = pneg %p134
      %p280 = pneg %p158
      %p281 = pneg %p155
      %p282 = pneg %p179
      %p283 = pneg %p176
      %p284 = pneg %p207
      %p285 = pneg %p204
      %p286 = scmp.lt.s32.totalorder %s22, 1
      %s287 = scalar_select %p286, %s22, 1
      %p288 = scmp.lt.s32.totalorder %s23, 0
      %s289 = scalar_select %p288, %s23, 0
      %s290 = sadd.s32 %s289, %s287
      %s291 = smul.addr %s290, 8
      %s292 = scalar_lea.vmem %s7, %s291
      %p293 = scmp.lt.s32.totalorder %s22, 1
      %s294 = scalar_select %p293, %s22, 1
      %p295 = scmp.lt.s32.totalorder %s23, 0
      %s296 = scalar_select %p295, %s23, 0
      %s297 = smul.addr %s294, 2
      %s298 = sadd.s32 %s296, %s297
      %s299 = smul.addr %s298, 8
      %s300 = scalar_lea.vmem %s0, %s299
      %p301 = scmp.lt.s32.totalorder %s22, 1
      %s302 = scalar_select %p301, %s22, 1
      %p303 = scmp.lt.s32.totalorder %s23, 0
      %s304 = scalar_select %p303, %s23, 0
      %s305 = sadd.s32 %s304, %s302
      %s306 = smul.addr %s305, 8
      %s307 = scalar_lea.vmem %s7, %s306
      %v308 = vld [vmem:[%s300] sm:$0xff]
      %v309 = vld [vmem:[%s300 + $0x8] sm:$0x3]
      %v311 = vrot.slane %v308, 3
      %v313 = vadd.f32 %v308, %v311
      %vm315 = vcmask 1041408
      %v316 = vrot.slane %v308, 6
      %v317 = vrot.slane %v309, 6
      %v318 = vsel %vm315, %v316, %v317
      %v320 = vadd.f32 %v313, %v318
      %v321 = vmul.f32 %v320, 0.33333334
      %v322 = vrot.slane %v308, 5
      %v324 = vsub.f32 %v308, %v322
      %v325 = vrot.slane %v308, 2
      %v327 = vsub.f32 %v308, %v325
      %v328 = vsub.f32 %v309, %v325
      %v330 = vrot.slane %v328, 4
      %v332 = vmul.f32 %v324, %v330
      %v334 = vrot.slane %v327, 2
      %v336 = vmul.f32 %v324, %v334
      %v338 = vrot.slane %v336, 1
      %v340 = vsub.f32 %v332, %v338
      %v341 = vmul.f32 %v340, 0.5
      %v342 = vrot.slane %v327, 1
      %v344 = vmul.f32 %v324, %v342
      %v345 = vrot.slane %v328, 5
      %v347 = vmul.f32 %v324, %v345
      %v349 = vrot.slane %v347, 6
      %v351 = vsub.f32 %v344, %v349
      %v352 = vmul.f32 %v351, 0.5
      %v353 = vrot.slane %v327, 4
      %v355 = vmul.f32 %v324, %v353
      %v356 = vsub.f32 %v355, %v338
      %v357 = vmul.f32 %v356, 0.5
      %v358 = vmul.f32 %v341, %v341
      %v359 = vmul.f32 %v352, %v352
      %v361 = vrot.slane %v359, 1
      %v363 = vadd.f32 %v358, %v361
      %v364 = vmul.f32 %v357, %v357
      %v366 = vrot.slane %v364, 7
      %v368 = vadd.f32 %v363, %v366
      %v369 = vmax.f32 %v368, 1e-06
      %v370 = vrsqrt.pop %v369
      %v371 = vmul.f32 %v369, %v370
      %vm372 = vcmp.eq.f32.partialorder %v369, inf
      %v373 = vsel %vm372, %v369, %v371
      %vm374 = vcmp.eq.f32.partialorder %v369, 0.0
      %v375 = vand.u32 %v369, 2147483648
      %v376 = vsel %vm374, %v375, %v373
      %v377 = vrcp.pop %v376
      %v378 = vmul.f32 1.0, %v377
      %v379 = vmul.f32 %v341, %v378
      %v381 = vrot.slane %v378, 7
      %v383 = vmul.f32 %v352, %v381
      %v384 = vrot.slane %v378, 1
      %v386 = vmul.f32 %v357, %v384
      %v388 = vrot.slane %v379, 1
      %v391 = vrot.slane %v383, 1
      %v394 = vrot.slane %v386, 6
      %vm396 = vcmask 1042432
      %v397 = vsel %vm396, %v321, %v388
      %vm398 = vcmask 1043456
      %v399 = vsel %vm398, %v397, %v391
      %vm400 = vcmask 1044480
      %v401 = vsel %vm400, %v399, %v394
      %v402 = vld [vmem:[%s1] sm:$0xff]
      %v403 = vld [vmem:[%s1 + $0x8] sm:$0xff]
      %v404 = vld [vmem:[%s2] sm:$0xff]
      %v405 = vld [vmem:[%s2 + $0x8] sm:$0xff]
      %407 = vset.pattern.permute.xlu0 0
      %408 = vperm.xlu0 %407, %v404
      %v409 = vpop.permute.xlu0 %408
      %412 = vset.pattern.permute.xlu0 0
      %413 = vperm.xlu0 %412, %v405
      %v414 = vpop.permute.xlu0 %413
      %vm416 = vcmask 48128
      %v418 = vsel %vm416, %v402, 0
      %v421 = vsel %vm416, %v403, 0
      %vm423 = vcmask 1045504
      %v425 = vsel %vm423, %v401, 0
      %427 = vmatprep.subr.mxu0 0.0
      %428 = vmatpush1.msra.mxu0 %v425
      %429 = vmatprep.subr.mxu0 0.0
      %430 = vmatpush1.msra.mxu0 0.0
      %431 = vmatprep.subr.mxu0 0.0
      %432 = vmatpush1.msra.mxu0 0.0
      %433 = vmatprep.subr.mxu0 0.0
      %434 = vmatpush1.msra.mxu0 0.0
      %435 = vmatprep.subr.mxu0 0.0
      %436 = vmatpush1.msra.mxu0 0.0
      %437 = vmatprep.subr.mxu0 0.0
      %438 = vmatpush1.msra.mxu0 0.0
      %439 = vmatprep.subr.mxu0 0.0
      %440 = vmatpush1.msra.mxu0 0.0
      %441 = vmatprep.subr.mxu0 0.0
      %442 = vmatpush1.msra.mxu0 0.0
      %443 = vmatprep.subr.mxu0 0.0
      %444 = vmatpush1.msra.mxu0 0.0
      %445 = vmatprep.subr.mxu0 0.0
      %446 = vmatpush1.msra.mxu0 0.0
      %447 = vmatprep.subr.mxu0 0.0
      %448 = vmatpush1.msra.mxu0 0.0
      %449 = vmatprep.subr.mxu0 0.0
      %450 = vmatpush1.msra.mxu0 0.0
      %451 = vmatprep.subr.mxu0 0.0
      %452 = vmatpush1.msra.mxu0 0.0
      %453 = vmatprep.subr.mxu0 0.0
      %454 = vmatpush1.msra.mxu0 0.0
      %455 = vmatprep.subr.mxu0 0.0
      %456 = vmatpush1.msra.mxu0 0.0
      %457 = vmatprep.subr.mxu0 0.0
      %458 = vmatpush1.msra.mxu0 0.0
      %459 = vmatprep.subr.mxu0 0.0
      %460 = vmatpush1.msra.mxu0 0.0
      %461 = vmatprep.subr.mxu0 0.0
      %462 = vmatpush1.msra.mxu0 0.0
      %463 = vmatprep.subr.mxu0 0.0
      %464 = vmatpush1.msra.mxu0 0.0
      %465 = vmatprep.subr.mxu0 0.0
      %466 = vmatpush1.msra.mxu0 0.0
      %467 = vmatprep.subr.mxu0 0.0
      %468 = vmatpush1.msra.mxu0 0.0
      %469 = vmatprep.subr.mxu0 0.0
      %470 = vmatpush1.msra.mxu0 0.0
      %471 = vmatprep.subr.mxu0 0.0
      %472 = vmatpush1.msra.mxu0 0.0
      %473 = vmatprep.subr.mxu0 0.0
      %474 = vmatpush1.msra.mxu0 0.0
      %475 = vmatprep.subr.mxu0 0.0
      %476 = vmatpush1.msra.mxu0 0.0
      %477 = vmatprep.subr.mxu0 0.0
      %478 = vmatpush1.msra.mxu0 0.0
      %479 = vmatprep.subr.mxu0 0.0
      %480 = vmatpush1.msra.mxu0 0.0
      %481 = vmatprep.subr.mxu0 0.0
      %482 = vmatpush1.msra.mxu0 0.0
      %483 = vmatprep.subr.mxu0 0.0
      %484 = vmatpush1.msra.mxu0 0.0
      %485 = vmatprep.subr.mxu0 0.0
      %486 = vmatpush1.msra.mxu0 0.0
      %487 = vmatprep.subr.mxu0 0.0
      %488 = vmatpush1.msra.mxu0 0.0
      %489 = vmatprep.subr.mxu0 0.0
      %490 = vmatpush1.msra.mxu0 0.0
      %491 = vmatprep.mubr.f32.mxu0 0.0
      %492 = vmatmul.mubr.f32.gmra.mrb[0].mxu0 %v418
      %v493 = vpop.f32.mrb[0].mxu0
      %v494 = vadd.f32 %v409, %v493
      %v495 = vpop.f32.mrb[0].mxu0
      %496 = vmatprep.mubr.f32.mxu0 0.0
      %497 = vmatmul.mubr.f32.gmra.mrb[0].mxu0 %v421
      %v498 = vpop.f32.mrb[0].mxu0
      %v499 = vadd.f32 %v414, %v498
      %v500 = vpop.f32.mrb[0].mxu0
      %501 = vdwg.mxu0
      %v502 = vxor.u32 %v494, 2147483648
      %v503 = vxor.u32 %v499, 2147483648
      %v504 = vmul.f32 %v502, 1.442695
      %v505 = vpow.pop %v504
      %v506 = vmul.f32 %v503, 1.442695
      %v507 = vpow.pop %v506
      %v508 = vadd.f32 %v505, 1.0
      %v509 = vadd.f32 %v507, 1.0
      %v510 = vrcp.pop %v508
      %v511 = vmul.f32 1.0, %v510
      %v512 = vrcp.pop %v509
      %v513 = vmul.f32 1.0, %v512
      %v514 = vld [vmem:[%s3] sm:$0xff]
      %v515 = vld [vmem:[%s3 + $0x8] sm:$0xff]
      %v516 = vld [vmem:[%s3 + $0x10] sm:$0xff]
      %v517 = vld [vmem:[%s3 + $0x18] sm:$0xff]
      %v518 = vld [vmem:[%s3 + $0x20] sm:$0xff]
      %v519 = vld [vmem:[%s3 + $0x28] sm:$0xff]
      %v520 = vld [vmem:[%s3 + $0x30] sm:$0xff]
      %v521 = vld [vmem:[%s3 + $0x38] sm:$0xff]
      %v522 = vld [vmem:[%s4] sm:$0xff]
      %v523 = vld [vmem:[%s4 + $0x8] sm:$0xff]
      %v524 = vld [vmem:[%s4 + $0x10] sm:$0xff]
      %v525 = vld [vmem:[%s4 + $0x18] sm:$0xff]
      %v526 = vld [vmem:[%s4 + $0x20] sm:$0xff]
      %v527 = vld [vmem:[%s4 + $0x28] sm:$0xff]
      %v528 = vld [vmem:[%s4 + $0x30] sm:$0xff]
      %v529 = vld [vmem:[%s4 + $0x38] sm:$0xff]
      %531 = vset.pattern.permute.xlu0 0
      %532 = vperm.xlu0 %531, %v522
      %v533 = vpop.permute.xlu0 %532
      %536 = vset.pattern.permute.xlu0 0
      %537 = vperm.xlu0 %536, %v523
      %v538 = vpop.permute.xlu0 %537
      %541 = vset.pattern.permute.xlu0 0
      %542 = vperm.xlu0 %541, %v524
      %v543 = vpop.permute.xlu0 %542
      %546 = vset.pattern.permute.xlu0 0
      %547 = vperm.xlu0 %546, %v525
      %v548 = vpop.permute.xlu0 %547
      %551 = vset.pattern.permute.xlu0 0
      %552 = vperm.xlu0 %551, %v526
      %v553 = vpop.permute.xlu0 %552
      %556 = vset.pattern.permute.xlu0 0
      %557 = vperm.xlu0 %556, %v527
      %v558 = vpop.permute.xlu0 %557
      %561 = vset.pattern.permute.xlu0 0
      %562 = vperm.xlu0 %561, %v528
      %v563 = vpop.permute.xlu0 %562
      %566 = vset.pattern.permute.xlu0 0
      %567 = vperm.xlu0 %566, %v529
      %v568 = vpop.permute.xlu0 %567
      %vm570 = vcmask 130048
      %v572 = vsel %vm570, %v514, 0
      %v575 = vsel %vm570, %v515, 0
      %v578 = vsel %vm570, %v516, 0
      %v581 = vsel %vm570, %v517, 0
      %v584 = vsel %vm570, %v518, 0
      %v587 = vsel %vm570, %v519, 0
      %v590 = vsel %vm570, %v520, 0
      %v593 = vsel %vm570, %v521, 0
      %595 = vmatprep.subr.mxu0 0.0
      %596 = vmatpush1.msra.mxu0 %v511
      %597 = vmatprep.subr.mxu0 0.0
      %598 = vmatpush1.msra.mxu0 %v513
      %599 = vmatprep.subr.mxu0 0.0
      %600 = vmatpush1.msra.mxu0 0.0
      %601 = vmatprep.subr.mxu0 0.0
      %602 = vmatpush1.msra.mxu0 0.0
      %603 = vmatprep.subr.mxu0 0.0
      %604 = vmatpush1.msra.mxu0 0.0
      %605 = vmatprep.subr.mxu0 0.0
      %606 = vmatpush1.msra.mxu0 0.0
      %607 = vmatprep.subr.mxu0 0.0
      %608 = vmatpush1.msra.mxu0 0.0
      %609 = vmatprep.subr.mxu0 0.0
      %610 = vmatpush1.msra.mxu0 0.0
      %611 = vmatprep.subr.mxu0 0.0
      %612 = vmatpush1.msra.mxu0 0.0
      %613 = vmatprep.subr.mxu0 0.0
      %614 = vmatpush1.msra.mxu0 0.0
      %615 = vmatprep.subr.mxu0 0.0
      %616 = vmatpush1.msra.mxu0 0.0
      %617 = vmatprep.subr.mxu0 0.0
      %618 = vmatpush1.msra.mxu0 0.0
      %619 = vmatprep.subr.mxu0 0.0
      %620 = vmatpush1.msra.mxu0 0.0
      %621 = vmatprep.subr.mxu0 0.0
      %622 = vmatpush1.msra.mxu0 0.0
      %623 = vmatprep.subr.mxu0 0.0
      %624 = vmatpush1.msra.mxu0 0.0
      %625 = vmatprep.subr.mxu0 0.0
      %626 = vmatpush1.msra.mxu0 0.0
      %627 = vmatprep.subr.mxu0 0.0
      %628 = vmatpush1.msra.mxu0 0.0
      %629 = vmatprep.subr.mxu0 0.0
      %630 = vmatpush1.msra.mxu0 0.0
      %631 = vmatprep.subr.mxu0 0.0
      %632 = vmatpush1.msra.mxu0 0.0
      %633 = vmatprep.subr.mxu0 0.0
      %634 = vmatpush1.msra.mxu0 0.0
      %635 = vmatprep.subr.mxu0 0.0
      %636 = vmatpush1.msra.mxu0 0.0
      %637 = vmatprep.subr.mxu0 0.0
      %638 = vmatpush1.msra.mxu0 0.0
      %639 = vmatprep.subr.mxu0 0.0
      %640 = vmatpush1.msra.mxu0 0.0
      %641 = vmatprep.subr.mxu0 0.0
      %642 = vmatpush1.msra.mxu0 0.0
      %643 = vmatprep.subr.mxu0 0.0
      %644 = vmatpush1.msra.mxu0 0.0
      %645 = vmatprep.subr.mxu0 0.0
      %646 = vmatpush1.msra.mxu0 0.0
      %647 = vmatprep.subr.mxu0 0.0
      %648 = vmatpush1.msra.mxu0 0.0
      %649 = vmatprep.subr.mxu0 0.0
      %650 = vmatpush1.msra.mxu0 0.0
      %651 = vmatprep.subr.mxu0 0.0
      %652 = vmatpush1.msra.mxu0 0.0
      %653 = vmatprep.subr.mxu0 0.0
      %654 = vmatpush1.msra.mxu0 0.0
      %655 = vmatprep.subr.mxu0 0.0
      %656 = vmatpush1.msra.mxu0 0.0
      %657 = vmatprep.subr.mxu0 0.0
      %658 = vmatpush1.msra.mxu0 0.0
      %659 = vmatprep.mubr.f32.mxu0 0.0
      %660 = vmatmul.mubr.f32.gmra.mrb[0].mxu0 %v572
      %v661 = vpop.f32.mrb[0].mxu0
      %v662 = vadd.f32 %v533, %v661
      %v663 = vpop.f32.mrb[0].mxu0
      %664 = vmatprep.mubr.f32.mxu0 0.0
      %665 = vmatmul.mubr.f32.gmra.mrb[0].mxu0 %v575
      %v666 = vpop.f32.mrb[0].mxu0
      %v667 = vadd.f32 %v538, %v666
      %v668 = vpop.f32.mrb[0].mxu0
      %669 = vmatprep.mubr.f32.mxu0 0.0
      %670 = vmatmul.mubr.f32.gmra.mrb[0].mxu0 %v578
      %v671 = vpop.f32.mrb[0].mxu0
      %v672 = vadd.f32 %v543, %v671
      %v673 = vpop.f32.mrb[0].mxu0
      %674 = vmatprep.mubr.f32.mxu0 0.0
      %675 = vmatmul.mubr.f32.gmra.mrb[0].mxu0 %v581
      %v676 = vpop.f32.mrb[0].mxu0
      %v677 = vadd.f32 %v548, %v676
      %v678 = vpop.f32.mrb[0].mxu0
      %679 = vmatprep.mubr.f32.mxu0 0.0
      %680 = vmatmul.mubr.f32.gmra.mrb[0].mxu0 %v584
      %v681 = vpop.f32.mrb[0].mxu0
      %v682 = vadd.f32 %v553, %v681
      %v683 = vpop.f32.mrb[0].mxu0
      %684 = vmatprep.mubr.f32.mxu0 0.0
      %685 = vmatmul.mubr.f32.gmra.mrb[0].mxu0 %v587
      %v686 = vpop.f32.mrb[0].mxu0
      %v687 = vadd.f32 %v558, %v686
      %v688 = vpop.f32.mrb[0].mxu0
      %689 = vmatprep.mubr.f32.mxu0 0.0
      %690 = vmatmul.mubr.f32.gmra.mrb[0].mxu0 %v590
      %v691 = vpop.f32.mrb[0].mxu0
      %v692 = vadd.f32 %v563, %v691
      %v693 = vpop.f32.mrb[0].mxu0
      %694 = vmatprep.mubr.f32.mxu0 0.0
      %695 = vmatmul.mubr.f32.gmra.mrb[0].mxu0 %v593
      %v696 = vpop.f32.mrb[0].mxu0
      %v697 = vadd.f32 %v568, %v696
      %v698 = vpop.f32.mrb[0].mxu0
      %699 = vdwg.mxu0
      %v700 = vxor.u32 %v662, 2147483648
      %v701 = vxor.u32 %v667, 2147483648
      %v702 = vxor.u32 %v672, 2147483648
      %v703 = vxor.u32 %v677, 2147483648
      %v704 = vxor.u32 %v682, 2147483648
      %v705 = vxor.u32 %v687, 2147483648
      %v706 = vxor.u32 %v692, 2147483648
      %v707 = vxor.u32 %v697, 2147483648
      %v708 = vmul.f32 %v700, 1.442695
      %v709 = vpow.pop %v708
      %v710 = vmul.f32 %v701, 1.442695
      %v711 = vpow.pop %v710
      %v712 = vmul.f32 %v702, 1.442695
      %v713 = vpow.pop %v712
      %v714 = vmul.f32 %v703, 1.442695
      %v715 = vpow.pop %v714
      %v716 = vmul.f32 %v704, 1.442695
      %v717 = vpow.pop %v716
      %v718 = vmul.f32 %v705, 1.442695
      %v719 = vpow.pop %v718
      %v720 = vmul.f32 %v706, 1.442695
      %v721 = vpow.pop %v720
      %v722 = vmul.f32 %v707, 1.442695
      %v723 = vpow.pop %v722
      %v724 = vadd.f32 %v709, 1.0
      %v725 = vadd.f32 %v711, 1.0
      %v726 = vadd.f32 %v713, 1.0
      %v727 = vadd.f32 %v715, 1.0
      %v728 = vadd.f32 %v717, 1.0
      %v729 = vadd.f32 %v719, 1.0
      %v730 = vadd.f32 %v721, 1.0
      %v731 = vadd.f32 %v723, 1.0
      %v732 = vrcp.pop %v724
      %v733 = vmul.f32 1.0, %v732
      %v734 = vrcp.pop %v725
      %v735 = vmul.f32 1.0, %v734
      %v736 = vrcp.pop %v726
      %v737 = vmul.f32 1.0, %v736
      %v738 = vrcp.pop %v727
      %v739 = vmul.f32 1.0, %v738
      %v740 = vrcp.pop %v728
      %v741 = vmul.f32 1.0, %v740
      %v742 = vrcp.pop %v729
      %v743 = vmul.f32 1.0, %v742
      %v744 = vrcp.pop %v730
      %v745 = vmul.f32 1.0, %v744
      %v746 = vrcp.pop %v731
      %v747 = vmul.f32 1.0, %v746
      %v748 = vld [vmem:[%s5] sm:$0x1f]
      %v749 = vld [vmem:[%s6] sm:$0x1f]
      %751 = vset.pattern.permute.xlu0 0
      %752 = vperm.xlu0 %751, %v749
      %v753 = vpop.permute.xlu0 %752
      %vm755 = vcmask 523264
      %v757 = vsel %vm755, %v748, 0
      %759 = vmatprep.subr.mxu0 0.0
      %760 = vmatpush1.msra.mxu0 %v733
      %761 = vmatprep.subr.mxu0 0.0
      %762 = vmatpush1.msra.mxu0 %v735
      %763 = vmatprep.subr.mxu0 0.0
      %764 = vmatpush1.msra.mxu0 %v737
      %765 = vmatprep.subr.mxu0 0.0
      %766 = vmatpush1.msra.mxu0 %v739
      %767 = vmatprep.subr.mxu0 0.0
      %768 = vmatpush1.msra.mxu0 %v741
      %769 = vmatprep.subr.mxu0 0.0
      %770 = vmatpush1.msra.mxu0 %v743
      %771 = vmatprep.subr.mxu0 0.0
      %772 = vmatpush1.msra.mxu0 %v745
      %773 = vmatprep.subr.mxu0 0.0
      %774 = vmatpush1.msra.mxu0 %v747
      %775 = vmatprep.subr.mxu0 0.0
      %776 = vmatpush1.msra.mxu0 0.0
      %777 = vmatprep.subr.mxu0 0.0
      %778 = vmatpush1.msra.mxu0 0.0
      %779 = vmatprep.subr.mxu0 0.0
      %780 = vmatpush1.msra.mxu0 0.0
      %781 = vmatprep.subr.mxu0 0.0
      %782 = vmatpush1.msra.mxu0 0.0
      %783 = vmatprep.subr.mxu0 0.0
      %784 = vmatpush1.msra.mxu0 0.0
      %785 = vmatprep.subr.mxu0 0.0
      %786 = vmatpush1.msra.mxu0 0.0
      %787 = vmatprep.subr.mxu0 0.0
      %788 = vmatpush1.msra.mxu0 0.0
      %789 = vmatprep.subr.mxu0 0.0
      %790 = vmatpush1.msra.mxu0 0.0
      %791 = vmatprep.subr.mxu0 0.0
      %792 = vmatpush1.msra.mxu0 0.0
      %793 = vmatprep.subr.mxu0 0.0
      %794 = vmatpush1.msra.mxu0 0.0
      %795 = vmatprep.subr.mxu0 0.0
      %796 = vmatpush1.msra.mxu0 0.0
      %797 = vmatprep.subr.mxu0 0.0
      %798 = vmatpush1.msra.mxu0 0.0
      %799 = vmatprep.subr.mxu0 0.0
      %800 = vmatpush1.msra.mxu0 0.0
      %801 = vmatprep.subr.mxu0 0.0
      %802 = vmatpush1.msra.mxu0 0.0
      %803 = vmatprep.subr.mxu0 0.0
      %804 = vmatpush1.msra.mxu0 0.0
      %805 = vmatprep.subr.mxu0 0.0
      %806 = vmatpush1.msra.mxu0 0.0
      %807 = vmatprep.subr.mxu0 0.0
      %808 = vmatpush1.msra.mxu0 0.0
      %809 = vmatprep.subr.mxu0 0.0
      %810 = vmatpush1.msra.mxu0 0.0
      %811 = vmatprep.subr.mxu0 0.0
      %812 = vmatpush1.msra.mxu0 0.0
      %813 = vmatprep.subr.mxu0 0.0
      %814 = vmatpush1.msra.mxu0 0.0
      %815 = vmatprep.subr.mxu0 0.0
      %816 = vmatpush1.msra.mxu0 0.0
      %817 = vmatprep.subr.mxu0 0.0
      %818 = vmatpush1.msra.mxu0 0.0
      %819 = vmatprep.subr.mxu0 0.0
      %820 = vmatpush1.msra.mxu0 0.0
      %821 = vmatprep.subr.mxu0 0.0
      %822 = vmatpush1.msra.mxu0 0.0
      %823 = vmatprep.mubr.f32.mxu0 0.0
      %824 = vmatmul.mubr.f32.gmra.mrb[0].mxu0 %v757
      %v825 = vpop.f32.mrb[0].mxu0
      %v826 = vadd.f32 %v753, %v825
      %v827 = vpop.f32.mrb[0].mxu0
      %828 = vdwg.mxu0
      %v829 = vrot.slane %v309, 5
      %v831 = vmul.f32 %v376, %v829
      %v833 = vrot.slane %v831, 7
      %v835 = vsel %vm400, %v826, %v833
      %836 = vst [vmem:[%s307] sm:$0x3f] %v835
      %p837 = scmp.lt.s32.totalorder %s22, 1
      %s838 = scalar_select %p837, %s22, 1
      %p839 = scmp.lt.s32.totalorder %s23, 0
      %s840 = scalar_select %p839, %s23, 0
      %s841 = sadd.s32 %s840, %s838
      %s842 = smul.addr %s841, 8
      %s843 = scalar_lea.vmem %s7, %s842
      // Predicated region
      $region49: #{tpu_custom_call.1} parent=47 // pred_check
        %p844 = pneg %p204
      $region50: #{tpu_custom_call.1} parent=47 // pred_check_branch
        %846 = sbr.rel (%p844) target = $region52
      $region51: #{tpu_custom_call.1} parent=47 // pred_region
        _
      $region52: #{tpu_custom_call.1} parent=47 // pred_fallthru
        _
    $region48: #{tpu_custom_call.1} parent=5 // pred_fallthru
      _
    %p847 = scmp.le.s32.totalorder 2, %s13
    // Predicated region
    $region53: #{tpu_custom_call.1} parent=5 // pred_check
      %p848 = pneg %p847
    $region54: #{tpu_custom_call.1} parent=5 // pred_check_branch
      %850 = sbr.rel (%p848) target = $region56
    $region55: #{tpu_custom_call.1} parent=5 // pred_region
      %s851 = ssub.s32 %s13, 2
      // Predicated region
      $region57: #{tpu_custom_call.1} parent=55 // pred_check
        %p852 = pneg %p210
      $region58: #{tpu_custom_call.1} parent=55 // pred_check_branch
        %854 = sbr.rel (%p852) target = $region60
      $region59: #{tpu_custom_call.1} parent=55 // pred_region
        %p855 = scmp.lt.s32.totalorder %s24, 1
        %s856 = scalar_select %p855, %s24, 1
        %p857 = scmp.lt.s32.totalorder %s25, 0
        %s858 = scalar_select %p857, %s25, 0
        %s859 = sadd.s32 %s858, %s856
        %s860 = smul.addr %s859, 8
        %s861 = scalar_lea.vmem %s7, %s860
      $region60: #{tpu_custom_call.1} parent=55 // pred_fallthru
        _
    $region56: #{tpu_custom_call.1} parent=5 // pred_fallthru
      _
  $region6: #{tpu_custom_call.1} parent=0 // loop_footer
    %s17 = sadd.s32 1, %s13
  $region7: #{tpu_custom_call.1} parent=0 // loop_footer_branch
    %12 = sbr.rel target = $region3
  $region8: #{tpu_custom_call.1} parent=0 // loop_exit
    _

</llo_original>
